<compile_context>
chip_gen: v7x
topology: tpu7x:2x2x1
jax: 0.10.0
libtpu: 0.0.40
codegen_flags: <defaults>
</compile_context>

<pallas_src>
import math

import jax
import jax.numpy as jnp
from jax.experimental import pallas as pl
from jax.experimental.pallas import tpu as pltpu

GROUP_SIZE = 256
NUM_BITS = 8
_LANE = 128


def _round_up(x, n):
    return (x + n - 1) // n * n


# ----------------------------------------------------------------------------
# "compress" (module __init__) — one-off parameter setup (plain JAX glue).
# All layout work (transpose, inverse scale, N padding) happens here so the
# hot forward path never rebuilds weight layouts in HBM.
# ----------------------------------------------------------------------------
def compress_weight(w, group_size=GROUP_SIZE, num_bits=NUM_BITS):
    n_out, k_in = w.shape
    num_groups = (k_in + group_size - 1) // group_size
    k_pad = num_groups * group_size
    if k_pad != k_in:
        w = jnp.pad(w, ((0, 0), (0, k_pad - k_in)))

    data = w.reshape(n_out, num_groups, group_size)
    B = 2 ** (num_bits - 1) - 1
    absmax = jnp.max(jnp.abs(data), axis=2, keepdims=True)
    # eps clamp: an all-zero group would otherwise give scale=inf -> NaN q.
    scale = B / jnp.maximum(absmax, 1e-12)                              # (N, G, 1)
    q = jnp.round(jnp.clip(data * scale, -B, B)).astype(jnp.int8)       # (N, G, gs)

    # ---- inference-friendly layouts (hoisted out of forward) ----
    n_pad = _round_up(n_out, _LANE)
    q_t = q.reshape(n_out, k_pad).T                                     # (Kp, N) int8
    inv_scale_t = (1.0 / scale).reshape(n_out, num_groups).T            # (G, N) f32
    if n_pad != n_out:
        q_t = jnp.pad(q_t, ((0, 0), (0, n_pad - n_out)))
        inv_scale_t = jnp.pad(inv_scale_t, ((0, 0), (0, n_pad - n_out)))
    inv_scale_t = inv_scale_t.reshape(num_groups, 1, n_pad).astype(jnp.float32)

    return {
        "q": q, "scale": scale,          # original quantized form (reference only)
        "q_t": q_t,                      # (Kp, Np) int8  — transposed weight
        "inv_scale_t": inv_scale_t,      # (G, 1, Np) f32 — per-group 1/scale
        "shape": (n_out, k_in),
        "k_pad": k_pad, "n_pad": n_pad, "num_groups": num_groups,
    }


# ----------------------------------------------------------------------------
# Pallas kernel: per-group int8 dequant-by-scaling-the-partial-product matmul.
# Grid = (M/tile_m, N/tile_n, K/tile_k), tile_k == group_size, K innermost.
# ----------------------------------------------------------------------------
def clinear_kernel(x_ref, qwt_ref, inv_scale_ref, bias_ref, o_ref, acc_ref):
    k = pl.program_id(2)

    @pl.when(k == 0)
    def _():
        acc_ref[...] = jnp.zeros_like(acc_ref)

    # int8 values (-127..127) are exactly representable in bf16 -> full-rate MXU.
    w = qwt_ref[...].astype(jnp.bfloat16)                       # (tile_k, tile_n)
    partial = jnp.dot(x_ref[...], w,                            # (tile_m, tile_n) f32
                      preferred_element_type=jnp.float32)
    # Per-(group, out_feature) dequant scale applied to the partial product
    # (scale is constant over the K-group, so it factors out of the dot).
    acc_ref[...] += partial * inv_scale_ref[0]                  # (1, tile_n) bcast

    @pl.when(k == pl.num_programs(2) - 1)
    def _():
        o_ref[...] = (acc_ref[...] + bias_ref[...]).astype(o_ref.dtype)


def clinear_forward(x, packed, bias):
    """Forward of CLinear. x: (..., K) float; returns (..., N) float32."""
    n_out, k_in = packed["shape"]
    k_pad, n_pad, g = packed["k_pad"], packed["n_pad"], packed["num_groups"]
    q_t, inv_scale_t = packed["q_t"], packed["inv_scale_t"]

    if bias is None:
        bias = jnp.zeros((n_out,), jnp.float32)
    bias2d = jnp.pad(bias.reshape(1, n_out).astype(jnp.float32),
                     ((0, 0), (0, n_pad - n_out)))

    lead = x.shape[:-1]
    m = math.prod(lead) if lead else 1
    x2d = x.reshape(m, k_in).astype(jnp.float32)
    if k_pad != k_in:
        # Padded weight columns quantize to 0, so zero-padding x is exact.
        x2d = jnp.pad(x2d, ((0, 0), (0, k_pad - k_in)))

    # --- tile selection ---
    tile_k = GROUP_SIZE                              # one quant group per K step
    tile_m = min(256, _round_up(m, 16))              # bf16 sublane multiple
    m_pad = _round_up(m, tile_m)
    tile_n = 512 if n_pad % 512 == 0 else (256 if n_pad % 256 == 0 else _LANE)

    if m_pad != m:
        x2d = jnp.pad(x2d, ((0, m_pad - m), (0, 0)))
    x2d = x2d.astype(jnp.bfloat16)                   # bf16 MXU operand, half the bytes

    grid = (m_pad // tile_m, n_pad // tile_n, k_pad // tile_k)

    out2d = pl.pallas_call(
        clinear_kernel,
        out_shape=jax.ShapeDtypeStruct((m_pad, n_pad), jnp.float32),
        grid_spec=pltpu.PrefetchScalarGridSpec(
            num_scalar_prefetch=0,
            grid=grid,
            in_specs=[
                pl.BlockSpec((tile_m, tile_k), lambda i, j, k: (i, k)),    # x bf16
                pl.BlockSpec((tile_k, tile_n), lambda i, j, k: (k, j)),    # int8 W^T
                pl.BlockSpec((1, 1, tile_n), lambda i, j, k: (k, 0, j)),   # 1/scale
                pl.BlockSpec((1, tile_n), lambda i, j, k: (0, j)),         # bias
            ],
            out_specs=pl.BlockSpec((tile_m, tile_n), lambda i, j, k: (i, j)),
            scratch_shapes=[pltpu.VMEM((tile_m, tile_n), jnp.float32)],
        ),
        compiler_params=pltpu.CompilerParams(
            dimension_semantics=("parallel", "parallel", "arbitrary"),
            vmem_limit_bytes=32 * 1024 * 1024),
    )(x2d, q_t, inv_scale_t, bias2d)

    out2d = out2d[:m, :n_out]
    return out2d.reshape(*lead, n_out)


# ----------------------------------------------------------------------------
# References for correctness checks.
# ----------------------------------------------------------------------------
def clinear_reference(x, packed, bias):
    """Exact module semantics: w_deq = q / scale ; x @ w_deq.T + bias (f32)."""
    q, scale = packed["q"], packed["scale"]
    n_out, k_in = packed["shape"]
    w_deq = (q.astype(jnp.float32) / scale).reshape(n_out, -1)[:, :k_in]
    return jnp.einsum("...k,nk->...n", x.astype(jnp.float32), w_deq) + bias


def clinear_reference_bf16(x, packed, bias):
    """Bit-matched reference using the same bf16 casts / per-group scaling."""
    n_out, k_in = packed["shape"]
    k_pad, n_pad, g = packed["k_pad"], packed["n_pad"], packed["num_groups"]
    lead = x.shape[:-1]
    m = math.prod(lead) if lead else 1
    x2d = x.reshape(m, k_in).astype(jnp.float32)
    if k_pad != k_in:
        x2d = jnp.pad(x2d, ((0, 0), (0, k_pad - k_in)))
    xg = x2d.astype(jnp.bfloat16).reshape(m, g, GROUP_SIZE)
    qg = packed["q_t"].astype(jnp.bfloat16).reshape(g, GROUP_SIZE, n_pad)
    part = jnp.einsum("mgk,gkn->gmn", xg, qg, preferred_element_type=jnp.float32)
    y = jnp.sum(part * packed["inv_scale_t"], axis=0)[:, :n_out] + bias
    return y.reshape(*lead, n_out)


if __name__ == "__main__":
    key = jax.random.PRNGKey(0)
    k_x, k_w, k_b = jax.random.split(key, 3)

    batch, seq = 2, 8
    in_features, out_features = 512, 256   # K multiple of group_size=256 -> 2 groups

    x = jax.random.normal(k_x, (batch, seq, in_features), dtype=jnp.float32)
    weight = jax.random.normal(k_w, (out_features, in_features), dtype=jnp.float32) * 0.05
    bias = jax.random.normal(k_b, (out_features,), dtype=jnp.float32) * 0.1

    packed = compress_weight(weight)

    out = clinear_forward(x, packed, bias)
    out = jax.block_until_ready(out)
    assert out.shape == (batch, seq, out_features)

    # 1) tight check against a reference doing the identical bf16/per-group math
    ref_bf16 = clinear_reference_bf16(x, packed, bias)
    denom = jnp.maximum(jnp.max(jnp.abs(ref_bf16)), 1.0)
    rel_err_bf16 = float(jnp.max(jnp.abs(out - ref_bf16)) / denom)
    assert rel_err_bf16 < 2e-3, rel_err_bf16

    # 2) check against the exact f32 module semantics (looser: bf16 MXU operands)
    ref = clinear_reference(x, packed, bias)
    denom = jnp.maximum(jnp.max(jnp.abs(ref)), 1.0)
    rel_err = float(jnp.max(jnp.abs(out - ref)) / denom)
    assert rel_err < 2e-2, rel_err

    print("KERNEL_OK")
</pallas_src>

<mosaic_0001>
module attributes {stable_mosaic.version = 11 : i64} {
  func.func @clinear_kernel(%arg0: i32, %arg1: i32, %arg2: i32, %arg3: memref<16x256xbf16, #tpu.memory_space<vmem>>, %arg4: memref<256x256xi8, #tpu.memory_space<vmem>>, %arg5: memref<1x1x256xf32, #tpu.memory_space<vmem>>, %arg6: memref<1x256xf32, #tpu.memory_space<vmem>>, %arg7: memref<16x256xf32, #tpu.memory_space<vmem>>, %arg8: memref<16x256xf32, #tpu.memory_space<vmem>>) attributes {dimension_semantics = [#tpu.dimension_semantics<parallel>, #tpu.dimension_semantics<parallel>, #tpu.dimension_semantics<arbitrary>], iteration_bounds = array<i64: 1, 1, 2>, scalar_prefetch = 0 : i64, scratch_operands = 1 : i64, tpu.core_type = #tpu.core_type<tc>, window_params = [{transform_indices = @transform_0, window_bounds = array<i64: 16, 256>}, {transform_indices = @transform_1, window_bounds = array<i64: 256, 256>}, {transform_indices = @transform_2, window_bounds = array<i64: 1, 1, 256>}, {transform_indices = @transform_3, window_bounds = array<i64: 1, 256>}, {transform_indices = @transform_4, window_bounds = array<i64: 16, 256>}]} {
    %c0_i32 = arith.constant 0 : i32
    %0 = arith.cmpi eq, %arg2, %c0_i32 : i32
    %1 = arith.extui %0 : i1 to i32
    %c0_i32_0 = arith.constant 0 : i32
    %2 = arith.cmpi ne, %1, %c0_i32_0 : i32
    scf.if %2 {
      %cst_12 = arith.constant 0.000000e+00 : f32
      %17 = vector.broadcast %cst_12 : f32 to vector<16x256xf32>
      %c0_13 = arith.constant 0 : index
      %c0_14 = arith.constant 0 : index
      %18 = vector.load %arg8[%c0_13, %c0_14] : memref<16x256xf32, #tpu.memory_space<vmem>>, vector<16x256xf32>
      tpu.vector_store %arg8[%c0_13, %c0_14], %17 {strides = array<i32>} : memref<16x256xf32, #tpu.memory_space<vmem>>, vector<16x256xf32>,
    } else {
    }
    %c0 = arith.constant 0 : index
    %c0_1 = arith.constant 0 : index
    %3 = vector.load %arg4[%c0, %c0_1] : memref<256x256xi8, #tpu.memory_space<vmem>>, vector<256x256xi8>
    %4 = arith.sitofp %3 : vector<256x256xi8> to vector<256x256xbf16>
    %c0_2 = arith.constant 0 : index
    %c0_3 = arith.constant 0 : index
    %5 = vector.load %arg3[%c0_2, %c0_3] : memref<16x256xbf16, #tpu.memory_space<vmem>>, vector<16x256xbf16>
    %cst = arith.constant dense<0.000000e+00> : vector<16x256xf32>
    %6 = tpu.matmul %5, %4, %cst {dimension_numbers = #tpu.dot_dimension_numbers<[1], [0], [0], [1], [0, 0, 1, 1], [], []>} : vector<16x256xbf16>, vector<256x256xbf16>, vector<16x256xf32> -> vector<16x256xf32>
    %c0_4 = arith.constant 0 : index
    %c0_5 = arith.constant 0 : index
    %7 = vector.load %arg8[%c0_4, %c0_5] : memref<16x256xf32, #tpu.memory_space<vmem>>, vector<16x256xf32>
    %c0_6 = arith.constant 0 : index
    %c0_7 = arith.constant 0 : index
    %c0_8 = arith.constant 0 : index
    %8 = vector.load %arg5[%c0_6, %c0_7, %c0_8] : memref<1x1x256xf32, #tpu.memory_space<vmem>>, vector<1x1x256xf32>
    %9 = vector.shape_cast %8 : vector<1x1x256xf32> to vector<1x256xf32>
    %10 = vector.broadcast %9 : vector<1x256xf32> to vector<16x256xf32>
    %11 = arith.mulf %6, %10 : vector<16x256xf32>
    %12 = arith.addf %7, %11 : vector<16x256xf32>
    %c0_9 = arith.constant 0 : index
    %c0_10 = arith.constant 0 : index
    %13 = vector.load %arg8[%c0_9, %c0_10] : memref<16x256xf32, #tpu.memory_space<vmem>>, vector<16x256xf32>
    tpu.vector_store %arg8[%c0_9, %c0_10], %12 {strides = array<i32>} : memref<16x256xf32, #tpu.memory_space<vmem>>, vector<16x256xf32>,
    %c1_i32 = arith.constant 1 : i32
    %14 = arith.cmpi eq, %arg2, %c1_i32 : i32
    %15 = arith.extui %14 : i1 to i32
    %c0_i32_11 = arith.constant 0 : i32
    %16 = arith.cmpi ne, %15, %c0_i32_11 : i32
    scf.if %16 {
      %c0_12 = arith.constant 0 : index
      %c0_13 = arith.constant 0 : index
      %17 = vector.load %arg8[%c0_12, %c0_13] : memref<16x256xf32, #tpu.memory_space<vmem>>, vector<16x256xf32>
      %c0_14 = arith.constant 0 : index
      %c0_15 = arith.constant 0 : index
      %18 = vector.load %arg6[%c0_14, %c0_15] : memref<1x256xf32, #tpu.memory_space<vmem>>, vector<1x256xf32>
      %19 = vector.broadcast %18 : vector<1x256xf32> to vector<16x256xf32>
      %20 = arith.addf %17, %19 : vector<16x256xf32>
      %c0_16 = arith.constant 0 : index
      %c0_17 = arith.constant 0 : index
      %21 = vector.load %arg7[%c0_16, %c0_17] : memref<16x256xf32, #tpu.memory_space<vmem>>, vector<16x256xf32>
      tpu.vector_store %arg7[%c0_16, %c0_17], %20 {strides = array<i32>} : memref<16x256xf32, #tpu.memory_space<vmem>>, vector<16x256xf32>,
    } else {
    }
    return
  }
  func.func @transform_0(%arg0: i32, %arg1: i32, %arg2: i32) -> (i32, i32) {
    %c0_i32 = arith.constant 0 : i32
    return %arg0, %arg2 : i32, i32
  }
  func.func @transform_1(%arg0: i32, %arg1: i32, %arg2: i32) -> (i32, i32) {
    %c0_i32 = arith.constant 0 : i32
    return %arg2, %arg1 : i32, i32
  }
  func.func @transform_2(%arg0: i32, %arg1: i32, %arg2: i32) -> (i32, i32, i32) {
    %c0_i32 = arith.constant 0 : i32
    %c0_i32_0 = arith.constant 0 : i32
    return %arg2, %c0_i32, %arg1 : i32, i32, i32
  }
  func.func @transform_3(%arg0: i32, %arg1: i32, %arg2: i32) -> (i32, i32) {
    %c0_i32 = arith.constant 0 : i32
    %c0_i32_0 = arith.constant 0 : i32
    return %c0_i32, %arg1 : i32, i32
  }
  func.func @transform_4(%arg0: i32, %arg1: i32, %arg2: i32) -> (i32, i32) {
    %c0_i32 = arith.constant 0 : i32
    return %arg0, %arg1 : i32, i32
  }
}

</mosaic_0001>

<llo_original>
// kernel: tpu_custom_call.1
$region0: #{tpu_custom_call.1}
  #allocation0 [shape = 'u32[]', space=smem, size = 0x4, offset = 0x4, fixed_abs, tag = 'smem constant byte address 0x4 - core index']
  #allocation1 [shape = 'u32[144,128]{1,0:T(1,128)}', space=vmem, size = 0x12000, scoped, tag = 'internal scratch']
  #allocation2 [shape = 'f32[16,256]{1,0:T(8,128)}', space=vmem, size = 0x4000, scoped, tag = 'scratch operand']
  %s0 = inlined_call_operand.hbm [shape: bf16[16,512], index: 0, kind: input, shape index: {}]
  %s1 = inlined_call_operand.hbm [shape: s8[512,256], index: 1, kind: input, shape index: {}]
  %s2 = inlined_call_operand.vmem [shape: f32[2,1,256], index: 2, kind: input, shape index: {}]
  %s3 = inlined_call_operand.vmem [shape: f32[1,256], index: 3, kind: input, shape index: {}]
  %s4 = inlined_call_operand.hbm [shape: f32[16,256], index: 4, kind: output, shape index: {}]
  %s5 = sld [smem:[#allocation0]]
  $region65: #{tpu_custom_call.1} parent=0
    _
  %s7 = ssub.s32 1, %s5
  %s8 = scalar_select 0, %s7, %s5
  $region1: #{tpu_custom_call.1} parent=0
    #allocation3 [shape = 'u8[16384]{0}', space=vmem, size = 0x4000, scoped, tag = 'input window, operand 0']
    #allocation4 [shape = 's32[2]{0}', space=sflag, size = 0x8, scoped, tag = 'scoped memory for tpu_custom_call.1']
    #allocation5 [shape = 's32[2]{0}', space=sflag, size = 0x8, scoped, tag = 'scoped memory for tpu_custom_call.1']
    #allocation6 [shape = 'u8[131072]{0}', space=vmem, size = 0x20000, scoped, tag = 'input window, operand 1']
    #allocation7 [shape = 's32[2]{0}', space=sflag, size = 0x8, scoped, tag = 'scoped memory for tpu_custom_call.1']
    #allocation8 [shape = 'u8[16384]{0}', space=vmem, size = 0x4000, scoped, tag = 'output window, operand 0, single buffered']
    %9 = vsyncpa [#allocation4], 0
    %s10 = scalar_lea.sflag [#allocation4], 1
    %11 = vsyncpa %s10, 0
    %12 = vsyncpa [#allocation7], 0
    %s13 = scalar_lea.sflag [#allocation7], 1
    %14 = vsyncpa %s13, 0
    %15 = vsyncpa [#allocation5], 0
    loop: start=0, step=1, limit=4
    $region2: #{tpu_custom_call.1} parent=1 // loop_pre_header
      _
    $region3: #{tpu_custom_call.1} parent=1 // loop_header
      %s17 = sphi 0, %s21
      %p18 = scmp.ge.s32.totalorder %s17, 4
      %s24 = sphi 0, %s43
      %s25 = sphi 0, %s39
      %s26 = sphi 0, %s35
      %s27 = sphi 0, %s24
      %s28 = sphi 0, %s25
      %s29 = sphi 0, %s26
      %s30 = sphi 0, %s27
      %s31 = sphi 0, %s28
      %s32 = sphi 0, %s29
      %s48 = sphi 0, %s50
      %s51 = sphi 0, %s48
      %s52 = sphi 0, %s51
      %s68 = sphi 0, %s52
      %s76 = sphi 0, %s78
      %s79 = sphi 0, %s76
      %s80 = sphi 0, %s79
      %s96 = sphi 0, %s80
      %s104 = sphi 0, %s106
      %s107 = sphi 0, %s104
      %s108 = sphi 0, %s107
      %s124 = sphi 0, %s108
      %s130 = sphi 0, %s132
      %s133 = sphi 0, %s130
      %s134 = sphi 0, %s133
      %s150 = sphi 0, %s134
      %s158 = sphi 0, %s160
      %s161 = sphi 0, %s158
      %s162 = sphi 0, %s161
      %s178 = sphi 0, %s162
    $region4: #{tpu_custom_call.1} parent=1 // loop_header_branch
      %20 = sbr.rel (%p18) target = $region8
    $region5: #{tpu_custom_call.1} parent=1 // loop_body
      %s22 = ssub.s32 %s17, 1
      %s23 = ssub.s32 %s17, 2
      %s33 = sadd.s32 1, %s26
      %p34 = scmp.ge.s32.totalorder %s33, 2
      %s35 = scalar_select %p34, 0, %s33
      %s36 = sadd.s32 1, %s25
      %s37 = scalar_select %p34, %s36, %s25
      %p38 = scmp.ge.s32.totalorder %s37, 1
      %s39 = scalar_select %p38, 0, %s37
      %s40 = sadd.s32 1, %s24
      %s41 = scalar_select %p38, %s40, %s24
      %p42 = scmp.ge.s32.totalorder %s41, 1
      %s43 = scalar_select %p42, 0, %s41
      %s44 = ssub.s32 %s24, %s43
      %s45 = ssub.s32 %s26, %s35
      %s46 = sor.u32 %s44, %s45
      %p47 = scmp.eq.s32.totalorder %s46, 0
      %s49 = sadd.s32 %s48, 1
      %s50 = scalar_select %p47, %s48, %s49
      %p53 = pneg %p47
      %p54 = scmp.eq.s32.totalorder %s17, 1
      %p55 = por %p53, %p54
      %p56 = scmp.ne.s32.totalorder %s48, %s51
      %p57 = scmp.eq.s32.totalorder %s17, 0
      %p58 = por %p56, %p57
      %p59 = scmp.ne.s32.totalorder %s48, %s51
      %p60 = scmp.eq.s32.totalorder %s22, 1
      %p61 = por %p59, %p60
      %p62 = scmp.ne.s32.totalorder %s51, %s52
      %p63 = scmp.eq.s32.totalorder %s22, 0
      %p64 = por %p62, %p63
      %p65 = scmp.ne.s32.totalorder %s51, %s52
      %p66 = scmp.eq.s32.totalorder %s23, 1
      %p67 = por %p65, %p66
      %p69 = scmp.ne.s32.totalorder %s52, %s68
      %p70 = scmp.eq.s32.totalorder %s23, 0
      %p71 = por %p69, %p70
      %s72 = ssub.s32 %s26, %s35
      %s73 = ssub.s32 %s25, %s39
      %s74 = sor.u32 %s72, %s73
      %p75 = scmp.eq.s32.totalorder %s74, 0
      %s77 = sadd.s32 %s76, 1
      %s78 = scalar_select %p75, %s76, %s77
      %p81 = pneg %p75
      %p82 = scmp.eq.s32.totalorder %s17, 1
      %p83 = por %p81, %p82
      %p84 = scmp.ne.s32.totalorder %s76, %s79
      %p85 = scmp.eq.s32.totalorder %s17, 0
      %p86 = por %p84, %p85
      %p87 = scmp.ne.s32.totalorder %s76, %s79
      %p88 = scmp.eq.s32.totalorder %s22, 1
      %p89 = por %p87, %p88
      %p90 = scmp.ne.s32.totalorder %s79, %s80
      %p91 = scmp.eq.s32.totalorder %s22, 0
      %p92 = por %p90, %p91
      %p93 = scmp.ne.s32.totalorder %s79, %s80
      %p94 = scmp.eq.s32.totalorder %s23, 1
      %p95 = por %p93, %p94
      %p97 = scmp.ne.s32.totalorder %s80, %s96
      %p98 = scmp.eq.s32.totalorder %s23, 0
      %p99 = por %p97, %p98
      %s100 = ssub.s32 %s26, %s35
      %s101 = ssub.s32 %s25, %s39
      %s102 = sor.u32 %s100, %s101
      %p103 = scmp.eq.s32.totalorder %s102, 0
      %s105 = sadd.s32 %s104, 1
      %s106 = scalar_select %p103, %s104, %s105
      %p109 = pneg %p103
      %p110 = scmp.eq.s32.totalorder %s17, 1
      %p111 = por %p109, %p110
      %p112 = scmp.ne.s32.totalorder %s104, %s107
      %p113 = scmp.eq.s32.totalorder %s17, 0
      %p114 = por %p112, %p113
      %p115 = scmp.ne.s32.totalorder %s104, %s107
      %p116 = scmp.eq.s32.totalorder %s22, 1
      %p117 = por %p115, %p116
      %p118 = scmp.ne.s32.totalorder %s107, %s108
      %p119 = scmp.eq.s32.totalorder %s22, 0
      %p120 = por %p118, %p119
      %p121 = scmp.ne.s32.totalorder %s107, %s108
      %p122 = scmp.eq.s32.totalorder %s23, 1
      %p123 = por %p121, %p122
      %p125 = scmp.ne.s32.totalorder %s108, %s124
      %p126 = scmp.eq.s32.totalorder %s23, 0
      %p127 = por %p125, %p126
      %s128 = ssub.s32 %s25, %s39
      %p129 = scmp.eq.s32.totalorder %s128, 0
      %s131 = sadd.s32 %s130, 1
      %s132 = scalar_select %p129, %s130, %s131
      %p135 = pneg %p129
      %p136 = scmp.eq.s32.totalorder %s17, 1
      %p137 = por %p135, %p136
      %p138 = scmp.ne.s32.totalorder %s130, %s133
      %p139 = scmp.eq.s32.totalorder %s17, 0
      %p140 = por %p138, %p139
      %p141 = scmp.ne.s32.totalorder %s130, %s133
      %p142 = scmp.eq.s32.totalorder %s22, 1
      %p143 = por %p141, %p142
      %p144 = scmp.ne.s32.totalorder %s133, %s134
      %p145 = scmp.eq.s32.totalorder %s22, 0
      %p146 = por %p144, %p145
      %p147 = scmp.ne.s32.totalorder %s133, %s134
      %p148 = scmp.eq.s32.totalorder %s23, 1
      %p149 = por %p147, %p148
      %p151 = scmp.ne.s32.totalorder %s134, %s150
      %p152 = scmp.eq.s32.totalorder %s23, 0
      %p153 = por %p151, %p152
      %s154 = ssub.s32 %s24, %s43
      %s155 = ssub.s32 %s25, %s39
      %s156 = sor.u32 %s154, %s155
      %p157 = scmp.eq.s32.totalorder %s156, 0
      %s159 = sadd.s32 %s158, 1
      %s160 = scalar_select %p157, %s158, %s159
      %p163 = pneg %p157
      %p164 = scmp.eq.s32.totalorder %s17, 1
      %p165 = por %p163, %p164
      %p166 = scmp.ne.s32.totalorder %s158, %s161
      %p167 = scmp.eq.s32.totalorder %s17, 0
      %p168 = por %p166, %p167
      %p169 = scmp.ne.s32.totalorder %s158, %s161
      %p170 = scmp.eq.s32.totalorder %s22, 1
      %p171 = por %p169, %p170
      %p172 = scmp.ne.s32.totalorder %s161, %s162
      %p173 = scmp.eq.s32.totalorder %s22, 0
      %p174 = por %p172, %p173
      %p175 = scmp.ne.s32.totalorder %s161, %s162
      %p176 = scmp.eq.s32.totalorder %s23, 1
      %p177 = por %p175, %p176
      %p179 = scmp.ne.s32.totalorder %s162, %s178
      %p180 = scmp.eq.s32.totalorder %s23, 0
      %p181 = por %p179, %p180
      %p182 = scmp.le.s32.totalorder 1, %s17
      %p183 = scmp.lt.s32.totalorder %s17, 3
      %p184 = pnand %p182, %p183
      %p185 = pneg %p184
      // Predicated region
      $region9: #{tpu_custom_call.1} parent=5 // pred_check
        _
      $region10: #{tpu_custom_call.1} parent=5 // pred_check_branch
        %187 = sbr.rel (%p184) target = $region12
      $region11: #{tpu_custom_call.1} parent=5 // pred_region
        %s188 = ssub.s32 %s17, 1
        // Predicated region
        $region13: #{tpu_custom_call.1} parent=11 // pred_check
          %p189 = pneg %p146
        $region14: #{tpu_custom_call.1} parent=11 // pred_check_branch
          %191 = sbr.rel (%p189) target = $region16
        $region15: #{tpu_custom_call.1} parent=11 // pred_region
          %s192 = smul.u32 2, %s28
          %p193 = scmp.lt.s32.totalorder %s192, 1
          %s194 = scalar_select %p193, %s192, 1
          %s195 = scalar_lea.vmem %s3, %s194
          %s196 = smul.u32 2, %s28
        $region16: #{tpu_custom_call.1} parent=11 // pred_fallthru
          _
      $region12: #{tpu_custom_call.1} parent=5 // pred_fallthru
        _
      %p197 = scmp.lt.s32.totalorder %s17, 2
      // Predicated region
      $region17: #{tpu_custom_call.1} parent=5 // pred_check
        %p198 = pneg %p197
      $region18: #{tpu_custom_call.1} parent=5 // pred_check_branch
        %200 = sbr.rel (%p198) target = $region20
      $region19: #{tpu_custom_call.1} parent=5 // pred_region
        // Predicated region
        $region21: #{tpu_custom_call.1} parent=19 // pred_check
          %p201 = pneg %p58
        $region22: #{tpu_custom_call.1} parent=19 // pred_check_branch
          %203 = sbr.rel (%p201) target = $region24
        $region23: #{tpu_custom_call.1} parent=19 // pred_region
          %s204 = sand.u32 %s48, 1
          %s205 = scalar_lea.sflag [#allocation4], %s204
          %s206 = sand.u32 %s48, 1
          %s207 = smul.addr %s206, 16
          %s208 = scalar_lea.vmem [#allocation3], %s207
          %s209 = smul.u32 2, %s24
          %s210 = smul.u32 2, %s26
          %s212 = ssub.s32 256, 256
          %213 = vsyncadd %s205, %s212
          %s214 = smul.addr %s209, 4
          %s215 = sadd.s32 %s210, %s214
          %s216 = smul.addr %s215, 64
          %s217 = scalar_lea.hbm %s0, %s216
          %s218 = sshll.u32 %s208, 4
          %s219 = int_to_ptr.vmem [resolvable:$true] %s218
          %224 = dma.hbm_to_vmem [thread:$0]  %s217, 256, %s219, %s205, 256, 128, 8
        $region24: #{tpu_custom_call.1} parent=19 // pred_fallthru
          _
        // Predicated region
        $region25: #{tpu_custom_call.1} parent=19 // pred_check
          %p225 = pneg %p86
        $region26: #{tpu_custom_call.1} parent=19 // pred_check_branch
          %227 = sbr.rel (%p225) target = $region28
        $region27: #{tpu_custom_call.1} parent=19 // pred_region
          %s228 = sand.u32 %s76, 1
          %s229 = scalar_lea.sflag [#allocation7], %s228
          %s230 = sand.u32 %s76, 1
          %s231 = smul.addr %s230, 128
          %s232 = scalar_lea.vmem [#allocation6], %s231
          %s233 = smul.u32 8, %s26
          %s234 = smul.u32 2, %s25
          %s236 = ssub.s32 2048, 2048
          %237 = vsyncadd %s229, %s236
          %s238 = smul.addr %s233, 2
          %s239 = sadd.s32 %s234, %s238
          %s240 = smul.addr %s239, 128
          %s241 = scalar_lea.hbm %s1, %s240
          %s242 = sshll.u32 %s232, 4
          %s243 = int_to_ptr.vmem [resolvable:$true] %s242
          %248 = dma.hbm_to_vmem [thread:$0]  %s241, 2048, %s243, %s229, 256, 256, 16
        $region28: #{tpu_custom_call.1} parent=19 // pred_fallthru
          _
        // Predicated region
        $region29: #{tpu_custom_call.1} parent=19 // pred_check
          %p249 = pneg %p114
        $region30: #{tpu_custom_call.1} parent=19 // pred_check_branch
          %251 = sbr.rel (%p249) target = $region32
        $region31: #{tpu_custom_call.1} parent=19 // pred_region
          %s252 = smul.u32 2, %s25
          %p253 = scmp.lt.s32.totalorder %s26, 1
          %s254 = scalar_select %p253, %s26, 1
          %p255 = scmp.lt.s32.totalorder %s252, 1
          %s256 = scalar_select %p255, %s252, 1
          %s257 = smul.addr %s254, 2
          %s258 = sadd.s32 %s256, %s257
          %s259 = scalar_lea.vmem %s2, %s258
          %s260 = smul.u32 2, %s25
        $region32: #{tpu_custom_call.1} parent=19 // pred_fallthru
          _
      $region20: #{tpu_custom_call.1} parent=5 // pred_fallthru
        _
      %p261 = scmp.le.s32.totalorder 1, %s17
      %p262 = scmp.lt.s32.totalorder %s17, 3
      %p263 = pnand %p261, %p262
      %p264 = pneg %p263
      // Predicated region
      $region33: #{tpu_custom_call.1} parent=5 // pred_check
        _
      $region34: #{tpu_custom_call.1} parent=5 // pred_check_branch
        %266 = sbr.rel (%p263) target = $region36
      $region35: #{tpu_custom_call.1} parent=5 // pred_region
        %s267 = ssub.s32 %s17, 1
        %s268 = sand.u32 %s51, 1
        %s269 = scalar_lea.sflag [#allocation4], %s268
        %s270 = sand.u32 %s51, 1
        %s271 = smul.addr %s270, 16
        %s272 = scalar_lea.vmem [#allocation3], %s271
        // Predicated region
        $region37: #{tpu_custom_call.1} parent=35 // pred_check
          %p273 = pneg %p64
        $region38: #{tpu_custom_call.1} parent=35 // pred_check_branch
          %275 = sbr.rel (%p273) target = $region40
        $region39: #{tpu_custom_call.1} parent=35 // pred_region
          %276 = dma.done %s269, 256
        $region40: #{tpu_custom_call.1} parent=35 // pred_fallthru
          _
        %s277 = sand.u32 %s79, 1
        %s278 = scalar_lea.sflag [#allocation7], %s277
        %s279 = sand.u32 %s79, 1
        %s280 = smul.addr %s279, 128
        %s281 = scalar_lea.vmem [#allocation6], %s280
        // Predicated region
        $region41: #{tpu_custom_call.1} parent=35 // pred_check
          %p282 = pneg %p92
        $region42: #{tpu_custom_call.1} parent=35 // pred_check_branch
          %284 = sbr.rel (%p282) target = $region44
        $region43: #{tpu_custom_call.1} parent=35 // pred_region
          %285 = dma.done %s278, 2048
        $region44: #{tpu_custom_call.1} parent=35 // pred_fallthru
          _
        %s286 = sand.u32 %s51, 1
        %s287 = scalar_lea.sflag [#allocation4], %s286
        %s288 = sand.u32 %s51, 1
        %s289 = smul.addr %s288, 16
        %s290 = scalar_lea.vmem [#allocation3], %s289
        %p291 = pneg %p64
        %p292 = pneg %p61
        %s293 = sand.u32 %s79, 1
        %s294 = scalar_lea.sflag [#allocation7], %s293
        %s295 = sand.u32 %s79, 1
        %s296 = smul.addr %s295, 128
        %s297 = scalar_lea.vmem [#allocation6], %s296
        %p298 = pneg %p92
        %p299 = pneg %p89
        %s300 = smul.u32 2, %s28
        %p301 = scmp.lt.s32.totalorder %s29, 1
        %s302 = scalar_select %p301, %s29, 1
        %p303 = scmp.lt.s32.totalorder %s300, 1
        %s304 = scalar_select %p303, %s300, 1
        %s305 = smul.addr %s302, 2
        %s306 = sadd.s32 %s304, %s305
        %s307 = scalar_lea.vmem %s2, %s306
        %p308 = pneg %p120
        %p309 = pneg %p117
        %s310 = smul.u32 2, %s28
        %p311 = scmp.lt.s32.totalorder %s310, 1
        %s312 = scalar_select %p311, %s310, 1
        %s313 = scalar_lea.vmem %s3, %s312
        %p314 = pneg %p146
        %p315 = pneg %p143
        %p316 = pneg %p174
        %p317 = pneg %p171
        %s318 = smul.u32 2, %s27
        %s319 = smul.u32 2, %s29
        %s320 = smul.u32 8, %s29
        %s321 = smul.u32 2, %s28
        %s322 = smul.u32 2, %s28
        %p323 = scmp.lt.s32.totalorder %s29, 1
        %s324 = scalar_select %p323, %s29, 1
        %p325 = scmp.lt.s32.totalorder %s322, 1
        %s326 = scalar_select %p325, %s322, 1
        %s327 = smul.addr %s324, 2
        %s328 = sadd.s32 %s326, %s327
        %s329 = scalar_lea.vmem %s2, %s328
        %s330 = smul.u32 2, %s28
        %s331 = smul.u32 2, %s28
        %p332 = scmp.lt.s32.totalorder %s331, 1
        %s333 = scalar_select %p332, %s331, 1
        %s334 = scalar_lea.vmem %s3, %s333
        %s335 = smul.u32 2, %s28
        %s336 = smul.u32 2, %s27
        %s337 = smul.u32 2, %s28
        %p338 = scmp.eq.s32.totalorder %s29, 0
        // Predicated region
        $region45: #{tpu_custom_call.1} parent=35 // pred_check
          %p339 = pneg %p338
        $region46: #{tpu_custom_call.1} parent=35 // pred_check_branch
          %341 = sbr.rel (%p339) target = $region48
        $region47: #{tpu_custom_call.1} parent=35 // pred_region
          %342 = vst [vmem:[#allocation2] sm:$0xff] 0.0
          %343 = vst [vmem:[#allocation2 + $0x8] sm:$0xff] 0.0
          %344 = vst [vmem:[#allocation2 + $0x10] sm:$0xff] 0.0
          %345 = vst [vmem:[#allocation2 + $0x18] sm:$0xff] 0.0
        $region48: #{tpu_custom_call.1} parent=35 // pred_fallthru
          _
        %v346 = vld [vmem:[%s281] sm:$0xff]
        %v347 = vld [vmem:[%s281 + $0x8] sm:$0xff]
        %v348 = vld [vmem:[%s281 + $0x10] sm:$0xff]
        %v349 = vld [vmem:[%s281 + $0x18] sm:$0xff]
        %v350 = vld [vmem:[%s281 + $0x20] sm:$0xff]
        %v351 = vld [vmem:[%s281 + $0x28] sm:$0xff]
        %v352 = vld [vmem:[%s281 + $0x30] sm:$0xff]
        %v353 = vld [vmem:[%s281 + $0x38] sm:$0xff]
        %v354 = vld [vmem:[%s281 + $0x40] sm:$0xff]
        %v355 = vld [vmem:[%s281 + $0x48] sm:$0xff]
        %v356 = vld [vmem:[%s281 + $0x50] sm:$0xff]
        %v357 = vld [vmem:[%s281 + $0x58] sm:$0xff]
        %v358 = vld [vmem:[%s281 + $0x60] sm:$0xff]
        %v359 = vld [vmem:[%s281 + $0x68] sm:$0xff]
        %v360 = vld [vmem:[%s281 + $0x70] sm:$0xff]
        %v361 = vld [vmem:[%s281 + $0x78] sm:$0xff]
        %v362 = vunpack.c.l.s8.bf16 %v346
        %v363 = vunpack.c.l.s8.bf16 %v347
        %v364 = vunpack.c.h.s8.bf16 %v346
        %v365 = vunpack.c.h.s8.bf16 %v347
        %v366 = vunpack.c.l.s8.bf16 %v348
        %v367 = vunpack.c.l.s8.bf16 %v349
        %v368 = vunpack.c.h.s8.bf16 %v348
        %v369 = vunpack.c.h.s8.bf16 %v349
        %v370 = vunpack.c.l.s8.bf16 %v350
        %v371 = vunpack.c.l.s8.bf16 %v351
        %v372 = vunpack.c.h.s8.bf16 %v350
        %v373 = vunpack.c.h.s8.bf16 %v351
        %v374 = vunpack.c.l.s8.bf16 %v352
        %v375 = vunpack.c.l.s8.bf16 %v353
        %v376 = vunpack.c.h.s8.bf16 %v352
        %v377 = vunpack.c.h.s8.bf16 %v353
        %v378 = vunpack.c.l.s8.bf16 %v354
        %v379 = vunpack.c.l.s8.bf16 %v355
        %v380 = vunpack.c.h.s8.bf16 %v354
        %v381 = vunpack.c.h.s8.bf16 %v355
        %v382 = vunpack.c.l.s8.bf16 %v356
        %v383 = vunpack.c.l.s8.bf16 %v357
        %v384 = vunpack.c.h.s8.bf16 %v356
        %v385 = vunpack.c.h.s8.bf16 %v357
        %v386 = vunpack.c.l.s8.bf16 %v358
        %v387 = vunpack.c.l.s8.bf16 %v359
        %v388 = vunpack.c.h.s8.bf16 %v358
        %v389 = vunpack.c.h.s8.bf16 %v359
        %v390 = vunpack.c.l.s8.bf16 %v360
        %v391 = vunpack.c.l.s8.bf16 %v361
        %v392 = vunpack.c.h.s8.bf16 %v360
        %v393 = vunpack.c.h.s8.bf16 %v361
        %v394 = vld [vmem:[%s272] sm:$0xff]
        %v395 = vld [vmem:[%s272 + $0x8] sm:$0xff]
        %v398 = vunpack.c.l.b16 %v394
        %v399 = vunpack.c.h.b16 %v394
        %v400 = vunpack.c.l.b16 %v395
        %v401 = vunpack.c.h.b16 %v395
        %v402 = vpack.c.b16 %v400, %v398
        %v403 = vpack.c.b16 %v401, %v399
        %406 = vmatprep.subr.bf16.mxu0 %v363
        %407 = vmatpush1.bf16.msra.mxu0 %v362
        %408 = vmatprep.subr.bf16.mxu0 %v365
        %409 = vmatpush1.bf16.msra.mxu0 %v364
        %410 = vmatprep.subr.bf16.mxu0 %v367
        %411 = vmatpush1.bf16.msra.mxu0 %v366
        %412 = vmatprep.subr.bf16.mxu0 %v369
        %413 = vmatpush1.bf16.msra.mxu0 %v368
        %414 = vmatprep.subr.bf16.mxu0 %v371
        %415 = vmatpush1.bf16.msra.mxu0 %v370
        %416 = vmatprep.subr.bf16.mxu0 %v373
        %417 = vmatpush1.bf16.msra.mxu0 %v372
        %418 = vmatprep.subr.bf16.mxu0 %v375
        %419 = vmatpush1.bf16.msra.mxu0 %v374
        %420 = vmatprep.subr.bf16.mxu0 %v377
        %421 = vmatpush1.bf16.msra.mxu0 %v376
        %422 = vmatprep.subr.bf16.mxu0 %v379
        %423 = vmatpush1.bf16.msra.mxu0 %v378
        %424 = vmatprep.subr.bf16.mxu0 %v381
        %425 = vmatpush1.bf16.msra.mxu0 %v380
        %426 = vmatprep.subr.bf16.mxu0 %v383
        %427 = vmatpush1.bf16.msra.mxu0 %v382
        %428 = vmatprep.subr.bf16.mxu0 %v385
        %429 = vmatpush1.bf16.msra.mxu0 %v384
        %430 = vmatprep.subr.bf16.mxu0 %v387
        %431 = vmatpush1.bf16.msra.mxu0 %v386
        %432 = vmatprep.subr.bf16.mxu0 %v389
        %433 = vmatpush1.bf16.msra.mxu0 %v388
        %434 = vmatprep.subr.bf16.mxu0 %v391
        %435 = vmatpush1.bf16.msra.mxu0 %v390
        %436 = vmatprep.subr.bf16.mxu0 %v393
        %437 = vmatpush1.bf16.msra.mxu0 %v392
        %438 = vmatprep.mubr.bf16.mxu0 %v403
        %439 = vmatmul.mubr.bf16.gmra.mrb[0].mxu0 %v402
        %v440 = vpop.f32.mrb[0].mxu0
        %v441 = vadd.f32 0.0, %v440
        %v442 = vpop.f32.mrb[0].mxu0
        %v443 = vadd.f32 0.0, %v442
        %v444 = vpop.f32.mrb[0].mxu0
        %v445 = vadd.f32 0.0, %v444
        %v446 = vpop.f32.mrb[0].mxu0
        %v447 = vadd.f32 0.0, %v446
        %448 = vdwg.mxu0
        %v449 = vld [vmem:[#allocation2] sm:$0xff]
        %v450 = vld [vmem:[#allocation2 + $0x8] sm:$0xff]
        %v451 = vld [vmem:[#allocation2 + $0x10] sm:$0xff]
        %v452 = vld [vmem:[#allocation2 + $0x18] sm:$0xff]
        %v453 = vld [vmem:[%s329] sm:$0x3]
        %v455 = vlaneseq
        %v456 = vshrl.u32 %v455, 7
        %v457 = vsub.s32 0, %v456
        %v458 = vrot.slane %v453, %v457
        %v459 = vlaneseq
        %v460 = vshrl.u32 %v459, 7
        %v461 = vsub.s32 1, %v460
        %v462 = vrot.slane %v453, %v461
        %v465 = vmul.f32 %v441, %v458
        %v466 = vmul.f32 %v443, %v462
        %v467 = vmul.f32 %v445, %v458
        %v468 = vmul.f32 %v447, %v462
        %v469 = vadd.f32 %v449, %v465
        %v470 = vadd.f32 %v450, %v466
        %v471 = vadd.f32 %v451, %v467
        %v472 = vadd.f32 %v452, %v468
        %473 = vst [vmem:[#allocation2] sm:$0xff] %v469
        %474 = vst [vmem:[#allocation2 + $0x8] sm:$0xff] %v470
        %475 = vst [vmem:[#allocation2 + $0x10] sm:$0xff] %v471
        %476 = vst [vmem:[#allocation2 + $0x18] sm:$0xff] %v472
        %p477 = scmp.eq.s32.totalorder %s29, 1
        // Predicated region
        $region49: #{tpu_custom_call.1} parent=35 // pred_check
          %p478 = pneg %p477
        $region50: #{tpu_custom_call.1} parent=35 // pred_check_branch
          %480 = sbr.rel (%p478) target = $region52
        $region51: #{tpu_custom_call.1} parent=35 // pred_region
          %v481 = vld [vmem:[#allocation2] sm:$0xff]
          %v482 = vld [vmem:[#allocation2 + $0x8] sm:$0xff]
          %v483 = vld [vmem:[#allocation2 + $0x10] sm:$0xff]
          %v484 = vld [vmem:[#allocation2 + $0x18] sm:$0xff]
          %v485 = vld [vmem:[%s334] sm:$0x3]
          %v487 = vlaneseq
          %v488 = vshrl.u32 %v487, 7
          %v489 = vsub.s32 0, %v488
          %v490 = vrot.slane %v485, %v489
          %v491 = vlaneseq
          %v492 = vshrl.u32 %v491, 7
          %v493 = vsub.s32 1, %v492
          %v494 = vrot.slane %v485, %v493
          %v497 = vadd.f32 %v481, %v490
          %v498 = vadd.f32 %v482, %v494
          %v499 = vadd.f32 %v483, %v490
          %v500 = vadd.f32 %v484, %v494
          %501 = vst [vmem:[#allocation8] sm:$0xff] %v497
          %502 = vst [vmem:[#allocation8 + $0x8] sm:$0xff] %v498
          %503 = vst [vmem:[#allocation8 + $0x10] sm:$0xff] %v499
          %504 = vst [vmem:[#allocation8 + $0x18] sm:$0xff] %v500
        $region52: #{tpu_custom_call.1} parent=35 // pred_fallthru
          _
        // Predicated region
        $region53: #{tpu_custom_call.1} parent=35 // pred_check
          %p505 = pneg %p171
        $region54: #{tpu_custom_call.1} parent=35 // pred_check_branch
          %507 = sbr.rel (%p505) target = $region56
        $region55: #{tpu_custom_call.1} parent=35 // pred_region
          %s508 = smul.u32 2, %s27
          %s509 = smul.u32 2, %s28
          %s511 = ssub.s32 512, 512
          %512 = vsyncadd [#allocation5], %s511
          %s513 = smul.addr %s508, 2
          %s514 = sadd.s32 %s509, %s513
          %s515 = smul.addr %s514, 128
          %s516 = scalar_lea.hbm %s4, %s515
          %s517 = sshll.u32 [#allocation8], 4
          %s518 = int_to_ptr.vmem [resolvable:$true] %s517
          %523 = dma.vmem_to_hbm [thread:$0]  %s518, 512, %s516, [#allocation5], 256, 256, 16
        $region56: #{tpu_custom_call.1} parent=35 // pred_fallthru
          _
        // Predicated region
        $region57: #{tpu_custom_call.1} parent=35 // pred_check
          %p524 = pneg %p171
        $region58: #{tpu_custom_call.1} parent=35 // pred_check_branch
          %526 = sbr.rel (%p524) target = $region60
        $region59: #{tpu_custom_call.1} parent=35 // pred_region
          %527 = dma.done [#allocation5], 512
        $region60: #{tpu_custom_call.1} parent=35 // pred_fallthru
          _
      $region36: #{tpu_custom_call.1} parent=5 // pred_fallthru
        _
      %p528 = scmp.le.s32.totalorder 2, %s17
      // Predicated region
      $region61: #{tpu_custom_call.1} parent=5 // pred_check
        %p529 = pneg %p528
      $region62: #{tpu_custom_call.1} parent=5 // pred_check_branch
        %531 = sbr.rel (%p529) target = $region64
      $region63: #{tpu_custom_call.1} parent=5 // pred_region
        %s532 = ssub.s32 %s17, 2
      $region64: #{tpu_custom_call.1} parent=5 // pred_fallthru
        _
    $region6: #{tpu_custom_call.1} parent=1 // loop_footer
      %s21 = sadd.s32 1, %s17
    $region7: #{tpu_custom_call.1} parent=1 // loop_footer_branch
      %16 = sbr.rel target = $region3
    $region8: #{tpu_custom_call.1} parent=1 // loop_exit
      _
    %533 = vsyncpa [#allocation4], 1
    %s534 = scalar_lea.sflag [#allocation4], 1
    %535 = vsyncpa %s534, 1
    %536 = vsyncpa [#allocation7], 1
    %s537 = scalar_lea.sflag [#allocation7], 1
    %538 = vsyncpa %s537, 1
    %539 = vsyncpa [#allocation5], 1
    %s540 = scalar_lea.sflag [#allocation5], 1
    %541 = vsyncpa %s540, 1

</llo_original>
